<compile_context>
chip_gen: v7x
topology: tpu7x:2x2x1
jax: 0.10.0
libtpu: 0.0.40
codegen_flags: <defaults>
</compile_context>

<pallas_src>
import functools

import jax
import jax.numpy as jnp
from jax.experimental import pallas as pl
from jax.experimental.pallas import tpu as pltpu

_LANE = 128
_SUBLANE_BF16 = 16  # bf16 packs 16 rows per vreg


def _round_up(n, m):
    return ((n + m - 1) // m) * m


def _mlp_kernel(x_ref, w1_ref, b1_ref, w2_ref, b2_ref,
                w3_ref, b3_ref, w4_ref, b4_ref, o_ref):
    """Fused 4-layer MLP: bf16-operand matmuls, f32 accumulation, bias + ReLU."""
    x = x_ref[...].astype(jnp.bfloat16)                # cast in-kernel (x arrives f32)
    h = jnp.dot(x, w1_ref[...],
                preferred_element_type=jnp.float32) + b1_ref[...]
    h = jnp.maximum(h, 0.0).astype(jnp.bfloat16)       # ReLU (Dropout -> identity)

    h = jnp.dot(h, w2_ref[...],
                preferred_element_type=jnp.float32) + b2_ref[...]
    h = jnp.maximum(h, 0.0).astype(jnp.bfloat16)       # ReLU (Dropout -> identity)

    h = jnp.dot(h, w3_ref[...],
                preferred_element_type=jnp.float32) + b3_ref[...]
    h = jnp.maximum(h, 0.0).astype(jnp.bfloat16)       # ReLU

    out = jnp.dot(h, w4_ref[...],
                  preferred_element_type=jnp.float32) + b4_ref[...]
    o_ref[...] = out.astype(o_ref.dtype)               # single lane-dense (128-wide) store


def pack_params(params):
    """One-time packing: bf16 weights, last-layer output padded to a lane multiple.

    Keeps these casts/pads out of the per-call path (they were pure launch overhead).
    Biases stay f32 so they add into the f32 MXU accumulator.
    Returns (packed_dict, d_out).
    """
    d_out = params["w4"].shape[1]
    d_out_p = _round_up(d_out, _LANE)
    packed = {
        "w1": params["w1"].astype(jnp.bfloat16),
        "b1": params["b1"].astype(jnp.float32),
        "w2": params["w2"].astype(jnp.bfloat16),
        "b2": params["b2"].astype(jnp.float32),
        "w3": params["w3"].astype(jnp.bfloat16),
        "b3": params["b3"].astype(jnp.float32),
        "w4": jnp.pad(params["w4"],
                      ((0, 0), (0, d_out_p - d_out))).astype(jnp.bfloat16),
        "b4": jnp.pad(params["b4"].astype(jnp.float32),
                      ((0, 0), (0, d_out_p - d_out))),
    }
    return packed, d_out


@functools.partial(jax.jit,
                   static_argnames=("d_out", "batch_tile", "out_dtype", "trim_output"))
def simplified_physics_model(x, packed, *, d_out, batch_tile=1024,
                             out_dtype=jnp.float32, trim_output=True):
    """x: (B, input_dim) float32.  packed: output of pack_params()."""
    B, d_in = x.shape
    w1, b1 = packed["w1"], packed["b1"]
    w2, b2 = packed["w2"], packed["b2"]
    w3, b3 = packed["w3"], packed["b3"]
    w4, b4 = packed["w4"], packed["b4"]
    H1, H2, H3, d_out_p = w1.shape[1], w2.shape[1], w3.shape[1], w4.shape[1]

    # Batch tiling:
    #   * big tiles (default 1024) amortize the ~0.35 us per-grid-step overhead,
    #   * capped so larger batches keep >= 2 grid steps (v7x dual-TC sharding),
    #   * clamped to a 16-row multiple for tiny batches (dense bf16 sublane layout).
    tile = min(batch_tile,
               _round_up(-(-B // 2), 256),
               _round_up(B, _SUBLANE_BF16))
    B_p = _round_up(B, tile)
    grid = (B_p // tile,)

    if B_p != B:  # pad batch only; feature axis stays unpadded (full-dim block is legal)
        x = jnp.pad(x, ((0, B_p - B), (0, 0)))

    rep = lambda i: (0, 0)   # weights/biases resident across all grid steps
    in_specs = [
        pl.BlockSpec((tile, d_in), lambda i: (i, 0)),
        pl.BlockSpec(w1.shape, rep), pl.BlockSpec(b1.shape, rep),
        pl.BlockSpec(w2.shape, rep), pl.BlockSpec(b2.shape, rep),
        pl.BlockSpec(w3.shape, rep), pl.BlockSpec(b3.shape, rep),
        pl.BlockSpec(w4.shape, rep), pl.BlockSpec(b4.shape, rep),
    ]
    out_spec = pl.BlockSpec((tile, d_out_p), lambda i: (i, 0))

    out_itemsize = jnp.dtype(out_dtype).itemsize
    flops = 2 * B_p * (d_in * H1 + H1 * H2 + H2 * H3 + H3 * d_out_p)
    bytes_accessed = (
        B_p * d_in * 4 + B_p * d_out_p * out_itemsize
        + (w1.size + w2.size + w3.size + w4.size) * 2
        + (b1.size + b2.size + b3.size + b4.size) * 4)

    out_p = pl.pallas_call(
        _mlp_kernel,
        out_shape=jax.ShapeDtypeStruct((B_p, d_out_p), out_dtype),
        grid_spec=pltpu.PrefetchScalarGridSpec(
            num_scalar_prefetch=0,
            grid=grid,
            in_specs=in_specs,
            out_specs=out_spec,
        ),
        compiler_params=pltpu.CompilerParams(
            dimension_semantics=("parallel",)),
        cost_estimate=pl.CostEstimate(
            flops=flops, transcendentals=0, bytes_accessed=bytes_accessed),
    )(x, w1, b1, w2, b2, w3, b3, w4, b4)

    if trim_output:
        return out_p[:B, :d_out]
    return out_p   # padded (B_p, d_out_p) view; callers slice/fuse downstream


def init_params(key, input_dim, hidden_dim=128, output_dim=16):
    """Deterministic init mimicking nn.Linear (uniform +-1/sqrt(fan_in)).

    Weights stored transposed vs. PyTorch ((in, out) instead of (out, in)) so the
    kernel can do x @ W directly; biases kept as (1, fan_out).
    """
    dims = [(input_dim, hidden_dim),
            (hidden_dim, hidden_dim * 2),
            (hidden_dim * 2, hidden_dim),
            (hidden_dim, output_dim)]
    params = {}
    for idx, (fan_in, fan_out) in enumerate(dims, start=1):
        key, kw, kb = jax.random.split(key, 3)
        bound = 1.0 / jnp.sqrt(fan_in)
        params[f"w{idx}"] = jax.random.uniform(
            kw, (fan_in, fan_out), jnp.float32, -bound, bound)
        params[f"b{idx}"] = jax.random.uniform(
            kb, (1, fan_out), jnp.float32, -bound, bound)
    return params


def _reference(x, params):
    """Pure-JAX f32 reference of the same forward (eval mode)."""
    h = jnp.maximum(x @ params["w1"] + params["b1"], 0.0)
    h = jnp.maximum(h @ params["w2"] + params["b2"], 0.0)
    h = jnp.maximum(h @ params["w3"] + params["b3"], 0.0)
    return h @ params["w4"] + params["b4"]


if __name__ == "__main__":
    key = jax.random.PRNGKey(0)
    k_param, k_x1, k_x2 = jax.random.split(key, 3)

    input_dim, hidden_dim, output_dim = 32, 128, 16
    params = init_params(k_param, input_dim, hidden_dim, output_dim)
    packed, d_out = pack_params(params)   # one-time weight packing (bf16 + lane pad)

    # Small, tile-unaligned batch: exercises the pad-and-slice path (tile clamps to 16).
    x_small = jax.random.normal(k_x1, (10, input_dim), jnp.float32)
    out_small = jax.block_until_ready(
        simplified_physics_model(x_small, packed, d_out=d_out))
    ref_small = _reference(x_small, params)
    assert out_small.shape == (10, output_dim)
    assert jnp.allclose(out_small, ref_small, atol=2e-2, rtol=2e-2), \
        "mismatch vs reference (small batch)"

    # Larger batch: tile caps at 256 -> 2 grid steps (parallel axis -> both v7x TCs busy).
    x_big = jax.random.normal(k_x2, (300, input_dim), jnp.float32)
    out_big = jax.block_until_ready(
        simplified_physics_model(x_big, packed, d_out=d_out))
    ref_big = _reference(x_big, params)
    assert out_big.shape == (300, output_dim)
    assert jnp.allclose(out_big, ref_big, atol=2e-2, rtol=2e-2), \
        "mismatch vs reference (large batch)"

    # bf16 output path (halved writeback on v6e/v7x) + untrimmed padded buffer.
    out_bf16 = jax.block_until_ready(
        simplified_physics_model(x_big, packed, d_out=d_out,
                                 out_dtype=jnp.bfloat16, trim_output=False))
    assert out_bf16.shape == (512, 128) and out_bf16.dtype == jnp.bfloat16
    assert jnp.allclose(out_bf16[:300, :output_dim].astype(jnp.float32),
                        ref_big, atol=6e-2, rtol=6e-2), \
        "mismatch vs reference (bf16 output path)"

    print("KERNEL_OK")
</pallas_src>

<mosaic_0001>
module attributes {stable_mosaic.version = 11 : i64} {
  func.func @_mlp_kernel(%arg0: i32, %arg1: memref<16x32xf32, #tpu.memory_space<vmem>>, %arg2: memref<32x128xbf16, #tpu.memory_space<vmem>>, %arg3: memref<1x128xf32, #tpu.memory_space<vmem>>, %arg4: memref<128x256xbf16, #tpu.memory_space<vmem>>, %arg5: memref<1x256xf32, #tpu.memory_space<vmem>>, %arg6: memref<256x128xbf16, #tpu.memory_space<vmem>>, %arg7: memref<1x128xf32, #tpu.memory_space<vmem>>, %arg8: memref<128x128xbf16, #tpu.memory_space<vmem>>, %arg9: memref<1x128xf32, #tpu.memory_space<vmem>>, %arg10: memref<16x128xf32, #tpu.memory_space<vmem>>) attributes {dimension_semantics = [#tpu.dimension_semantics<parallel>], iteration_bounds = array<i64: 1>, scalar_prefetch = 0 : i64, scratch_operands = 0 : i64, tpu.core_type = #tpu.core_type<tc>, window_params = [{transform_indices = @transform_0, window_bounds = array<i64: 16, 32>}, {pipeline_mode = #tpu.pipeline_mode<synchronous>, transform_indices = @transform_1, window_bounds = array<i64: 32, 128>}, {pipeline_mode = #tpu.pipeline_mode<synchronous>, transform_indices = @transform_2, window_bounds = array<i64: 1, 128>}, {pipeline_mode = #tpu.pipeline_mode<synchronous>, transform_indices = @transform_3, window_bounds = array<i64: 128, 256>}, {pipeline_mode = #tpu.pipeline_mode<synchronous>, transform_indices = @transform_4, window_bounds = array<i64: 1, 256>}, {pipeline_mode = #tpu.pipeline_mode<synchronous>, transform_indices = @transform_5, window_bounds = array<i64: 256, 128>}, {pipeline_mode = #tpu.pipeline_mode<synchronous>, transform_indices = @transform_6, window_bounds = array<i64: 1, 128>}, {pipeline_mode = #tpu.pipeline_mode<synchronous>, transform_indices = @transform_7, window_bounds = array<i64: 128, 128>}, {pipeline_mode = #tpu.pipeline_mode<synchronous>, transform_indices = @transform_8, window_bounds = array<i64: 1, 128>}, {transform_indices = @transform_9, window_bounds = array<i64: 16, 128>}]} {
    %c0 = arith.constant 0 : index
    %c0_0 = arith.constant 0 : index
    %0 = vector.load %arg1[%c0, %c0_0] : memref<16x32xf32, #tpu.memory_space<vmem>>, vector<16x32xf32>
    %1 = arith.truncf %0 : vector<16x32xf32> to vector<16x32xbf16>
    %c0_1 = arith.constant 0 : index
    %c0_2 = arith.constant 0 : index
    %2 = vector.load %arg2[%c0_1, %c0_2] : memref<32x128xbf16, #tpu.memory_space<vmem>>, vector<32x128xbf16>
    %cst = arith.constant dense<0.000000e+00> : vector<16x128xf32>
    %3 = tpu.matmul %1, %2, %cst {dimension_numbers = #tpu.dot_dimension_numbers<[1], [0], [0], [1], [0, 0, 1, 1], [], []>} : vector<16x32xbf16>, vector<32x128xbf16>, vector<16x128xf32> -> vector<16x128xf32>
    %c0_3 = arith.constant 0 : index
    %c0_4 = arith.constant 0 : index
    %4 = vector.load %arg3[%c0_3, %c0_4] : memref<1x128xf32, #tpu.memory_space<vmem>>, vector<1x128xf32>
    %5 = vector.broadcast %4 : vector<1x128xf32> to vector<16x128xf32>
    %6 = arith.addf %3, %5 : vector<16x128xf32>
    %cst_5 = arith.constant 0.000000e+00 : f32
    %7 = vector.broadcast %cst_5 : f32 to vector<16x128xf32>
    %8 = arith.maximumf %6, %7 : vector<16x128xf32>
    %9 = arith.truncf %8 : vector<16x128xf32> to vector<16x128xbf16>
    %c0_6 = arith.constant 0 : index
    %c0_7 = arith.constant 0 : index
    %10 = vector.load %arg4[%c0_6, %c0_7] : memref<128x256xbf16, #tpu.memory_space<vmem>>, vector<128x256xbf16>
    %cst_8 = arith.constant dense<0.000000e+00> : vector<16x256xf32>
    %11 = tpu.matmul %9, %10, %cst_8 {dimension_numbers = #tpu.dot_dimension_numbers<[1], [0], [0], [1], [0, 0, 1, 1], [], []>} : vector<16x128xbf16>, vector<128x256xbf16>, vector<16x256xf32> -> vector<16x256xf32>
    %c0_9 = arith.constant 0 : index
    %c0_10 = arith.constant 0 : index
    %12 = vector.load %arg5[%c0_9, %c0_10] : memref<1x256xf32, #tpu.memory_space<vmem>>, vector<1x256xf32>
    %13 = vector.broadcast %12 : vector<1x256xf32> to vector<16x256xf32>
    %14 = arith.addf %11, %13 : vector<16x256xf32>
    %cst_11 = arith.constant 0.000000e+00 : f32
    %15 = vector.broadcast %cst_11 : f32 to vector<16x256xf32>
    %16 = arith.maximumf %14, %15 : vector<16x256xf32>
    %17 = arith.truncf %16 : vector<16x256xf32> to vector<16x256xbf16>
    %c0_12 = arith.constant 0 : index
    %c0_13 = arith.constant 0 : index
    %18 = vector.load %arg6[%c0_12, %c0_13] : memref<256x128xbf16, #tpu.memory_space<vmem>>, vector<256x128xbf16>
    %cst_14 = arith.constant dense<0.000000e+00> : vector<16x128xf32>
    %19 = tpu.matmul %17, %18, %cst_14 {dimension_numbers = #tpu.dot_dimension_numbers<[1], [0], [0], [1], [0, 0, 1, 1], [], []>} : vector<16x256xbf16>, vector<256x128xbf16>, vector<16x128xf32> -> vector<16x128xf32>
    %c0_15 = arith.constant 0 : index
    %c0_16 = arith.constant 0 : index
    %20 = vector.load %arg7[%c0_15, %c0_16] : memref<1x128xf32, #tpu.memory_space<vmem>>, vector<1x128xf32>
    %21 = vector.broadcast %20 : vector<1x128xf32> to vector<16x128xf32>
    %22 = arith.addf %19, %21 : vector<16x128xf32>
    %cst_17 = arith.constant 0.000000e+00 : f32
    %23 = vector.broadcast %cst_17 : f32 to vector<16x128xf32>
    %24 = arith.maximumf %22, %23 : vector<16x128xf32>
    %25 = arith.truncf %24 : vector<16x128xf32> to vector<16x128xbf16>
    %c0_18 = arith.constant 0 : index
    %c0_19 = arith.constant 0 : index
    %26 = vector.load %arg8[%c0_18, %c0_19] : memref<128x128xbf16, #tpu.memory_space<vmem>>, vector<128x128xbf16>
    %cst_20 = arith.constant dense<0.000000e+00> : vector<16x128xf32>
    %27 = tpu.matmul %25, %26, %cst_20 {dimension_numbers = #tpu.dot_dimension_numbers<[1], [0], [0], [1], [0, 0, 1, 1], [], []>} : vector<16x128xbf16>, vector<128x128xbf16>, vector<16x128xf32> -> vector<16x128xf32>
    %c0_21 = arith.constant 0 : index
    %c0_22 = arith.constant 0 : index
    %28 = vector.load %arg9[%c0_21, %c0_22] : memref<1x128xf32, #tpu.memory_space<vmem>>, vector<1x128xf32>
    %29 = vector.broadcast %28 : vector<1x128xf32> to vector<16x128xf32>
    %30 = arith.addf %27, %29 : vector<16x128xf32>
    %c0_23 = arith.constant 0 : index
    %c0_24 = arith.constant 0 : index
    %31 = vector.load %arg10[%c0_23, %c0_24] : memref<16x128xf32, #tpu.memory_space<vmem>>, vector<16x128xf32>
    tpu.vector_store %arg10[%c0_23, %c0_24], %30 {strides = array<i32>} : memref<16x128xf32, #tpu.memory_space<vmem>>, vector<16x128xf32>,
    return
  }
  func.func @transform_0(%arg0: i32) -> (i32, i32) {
    %c0_i32 = arith.constant 0 : i32
    %c0_i32_0 = arith.constant 0 : i32
    return %arg0, %c0_i32 : i32, i32
  }
  func.func @transform_1(%arg0: i32) -> (i32, i32) {
    %c0_i32 = arith.constant 0 : i32
    %c0_i32_0 = arith.constant 0 : i32
    %c0_i32_1 = arith.constant 0 : i32
    return %c0_i32, %c0_i32_0 : i32, i32
  }
  func.func @transform_2(%arg0: i32) -> (i32, i32) {
    %c0_i32 = arith.constant 0 : i32
    %c0_i32_0 = arith.constant 0 : i32
    %c0_i32_1 = arith.constant 0 : i32
    return %c0_i32, %c0_i32_0 : i32, i32
  }
  func.func @transform_3(%arg0: i32) -> (i32, i32) {
    %c0_i32 = arith.constant 0 : i32
    %c0_i32_0 = arith.constant 0 : i32
    %c0_i32_1 = arith.constant 0 : i32
    return %c0_i32, %c0_i32_0 : i32, i32
  }
  func.func @transform_4(%arg0: i32) -> (i32, i32) {
    %c0_i32 = arith.constant 0 : i32
    %c0_i32_0 = arith.constant 0 : i32
    %c0_i32_1 = arith.constant 0 : i32
    return %c0_i32, %c0_i32_0 : i32, i32
  }
  func.func @transform_5(%arg0: i32) -> (i32, i32) {
    %c0_i32 = arith.constant 0 : i32
    %c0_i32_0 = arith.constant 0 : i32
    %c0_i32_1 = arith.constant 0 : i32
    return %c0_i32, %c0_i32_0 : i32, i32
  }
  func.func @transform_6(%arg0: i32) -> (i32, i32) {
    %c0_i32 = arith.constant 0 : i32
    %c0_i32_0 = arith.constant 0 : i32
    %c0_i32_1 = arith.constant 0 : i32
    return %c0_i32, %c0_i32_0 : i32, i32
  }
  func.func @transform_7(%arg0: i32) -> (i32, i32) {
    %c0_i32 = arith.constant 0 : i32
    %c0_i32_0 = arith.constant 0 : i32
    %c0_i32_1 = arith.constant 0 : i32
    return %c0_i32, %c0_i32_0 : i32, i32
  }
  func.func @transform_8(%arg0: i32) -> (i32, i32) {
    %c0_i32 = arith.constant 0 : i32
    %c0_i32_0 = arith.constant 0 : i32
    %c0_i32_1 = arith.constant 0 : i32
    return %c0_i32, %c0_i32_0 : i32, i32
  }
  func.func @transform_9(%arg0: i32) -> (i32, i32) {
    %c0_i32 = arith.constant 0 : i32
    %c0_i32_0 = arith.constant 0 : i32
    return %arg0, %c0_i32 : i32, i32
  }
}

</mosaic_0001>

<llo_original>
// kernel: simplified_physics_model.1
$region0: #{simplified_physics_model.1}
  #allocation0 [shape = 'u32[]', space=smem, size = 0x4, offset = 0x4, fixed_abs, tag = 'smem constant byte address 0x4 - core index']
  #allocation1 [shape = 'u32[144,128]{1,0:T(1,128)}', space=vmem, size = 0x12000, scoped, tag = 'internal scratch']
  %s0 = inlined_call_operand.vmem [shape: f32[16,32], index: 0, kind: input, shape index: {}]
  %s1 = inlined_call_operand.vmem [shape: bf16[32,128], index: 1, kind: input, shape index: {}]
  %s2 = inlined_call_operand.vmem [shape: f32[1,128], index: 2, kind: input, shape index: {}]
  %s3 = inlined_call_operand.hbm [shape: bf16[128,256], index: 3, kind: input, shape index: {}]
  %s4 = inlined_call_operand.vmem [shape: f32[1,256], index: 4, kind: input, shape index: {}]
  %s5 = inlined_call_operand.hbm [shape: bf16[256,128], index: 5, kind: input, shape index: {}]
  %s6 = inlined_call_operand.vmem [shape: f32[1,128], index: 6, kind: input, shape index: {}]
  %s7 = inlined_call_operand.hbm [shape: bf16[128,128], index: 7, kind: input, shape index: {}]
  %s8 = inlined_call_operand.vmem [shape: f32[1,128], index: 8, kind: input, shape index: {}]
  %s9 = inlined_call_operand.hbm [shape: f32[16,128], index: 9, kind: output, shape index: {}]
  %s10 = sld [smem:[#allocation0]]
  $region58: #{simplified_physics_model.1} parent=0
    _
  %s12 = ssub.s32 1, %s10
  %s13 = scalar_select 0, %s12, %s10
  $region1: #{simplified_physics_model.1} parent=0
    #allocation2 [shape = 'u8[65536]{0}', space=vmem, size = 0x10000, scoped, tag = 'input window, operand 3, single buffered']
    #allocation3 [shape = 's32[1]{0}', space=sflag, size = 0x4, scoped, tag = 'scoped memory for simplified_physics_model.1']
    #allocation4 [shape = 's32[1]{0}', space=sflag, size = 0x4, scoped, tag = 'scoped memory for simplified_physics_model.1']
    #allocation5 [shape = 'u8[65536]{0}', space=vmem, size = 0x10000, scoped, tag = 'input window, operand 5, single buffered']
    #allocation6 [shape = 's32[1]{0}', space=sflag, size = 0x4, scoped, tag = 'scoped memory for simplified_physics_model.1']
    #allocation7 [shape = 'u8[32768]{0}', space=vmem, size = 0x8000, scoped, tag = 'input window, operand 7, single buffered']
    #allocation8 [shape = 'u8[8192]{0}', space=vmem, size = 0x2000, scoped, tag = 'output window, operand 0, single buffered']
    %14 = vsyncpa [#allocation3], 0
    %15 = vsyncpa [#allocation6], 0
    %16 = vsyncpa [#allocation4], 0
    // Predicated region
    $region2: #{simplified_physics_model.1} parent=1 // pred_check
      _
    $region3: #{simplified_physics_model.1} parent=1 // pred_check_branch
      %18 = sbr.rel (0) target = $region5
    $region4: #{simplified_physics_model.1} parent=1 // pred_region
      _
    $region5: #{simplified_physics_model.1} parent=1 // pred_fallthru
      _
    // Predicated region
    $region6: #{simplified_physics_model.1} parent=1 // pred_check
      _
    $region7: #{simplified_physics_model.1} parent=1 // pred_check_branch
      %20 = sbr.rel (0) target = $region9
    $region8: #{simplified_physics_model.1} parent=1 // pred_region
      _
    $region9: #{simplified_physics_model.1} parent=1 // pred_fallthru
      _
    // Predicated region
    $region10: #{simplified_physics_model.1} parent=1 // pred_check
      _
    $region11: #{simplified_physics_model.1} parent=1 // pred_check_branch
      %22 = sbr.rel (0) target = $region13
    $region12: #{simplified_physics_model.1} parent=1 // pred_region
      _
    $region13: #{simplified_physics_model.1} parent=1 // pred_fallthru
      _
    // Predicated region
    $region14: #{simplified_physics_model.1} parent=1 // pred_check
      _
    $region15: #{simplified_physics_model.1} parent=1 // pred_check_branch
      %24 = sbr.rel (0) target = $region17
    $region16: #{simplified_physics_model.1} parent=1 // pred_region
      %s26 = ssub.s32 2048, 2048
      %27 = vsyncadd [#allocation3], %s26
      %s28 = sshll.u32 [#allocation2], 4
      %s29 = int_to_ptr.vmem [resolvable:$true] %s28
      %34 = dma.hbm_to_vmem [thread:$0]  %s3, 2048, %s29, [#allocation3], 128, 128, 8
    $region17: #{simplified_physics_model.1} parent=1 // pred_fallthru
      _
    // Predicated region
    $region18: #{simplified_physics_model.1} parent=1 // pred_check
      _
    $region19: #{simplified_physics_model.1} parent=1 // pred_check_branch
      %36 = sbr.rel (0) target = $region21
    $region20: #{simplified_physics_model.1} parent=1 // pred_region
      _
    $region21: #{simplified_physics_model.1} parent=1 // pred_fallthru
      _
    // Predicated region
    $region22: #{simplified_physics_model.1} parent=1 // pred_check
      _
    $region23: #{simplified_physics_model.1} parent=1 // pred_check_branch
      %38 = sbr.rel (0) target = $region25
    $region24: #{simplified_physics_model.1} parent=1 // pred_region
      %s40 = ssub.s32 2048, 2048
      %41 = vsyncadd [#allocation6], %s40
      %s42 = sshll.u32 [#allocation5], 4
      %s43 = int_to_ptr.vmem [resolvable:$true] %s42
      %48 = dma.hbm_to_vmem [thread:$0]  %s5, 2048, %s43, [#allocation6], 64, 64, 4
    $region25: #{simplified_physics_model.1} parent=1 // pred_fallthru
      _
    // Predicated region
    $region26: #{simplified_physics_model.1} parent=1 // pred_check
      _
    $region27: #{simplified_physics_model.1} parent=1 // pred_check_branch
      %50 = sbr.rel (0) target = $region29
    $region28: #{simplified_physics_model.1} parent=1 // pred_region
      _
    $region29: #{simplified_physics_model.1} parent=1 // pred_fallthru
      _
    // Predicated region
    $region30: #{simplified_physics_model.1} parent=1 // pred_check
      _
    $region31: #{simplified_physics_model.1} parent=1 // pred_check_branch
      %52 = sbr.rel (0) target = $region33
    $region32: #{simplified_physics_model.1} parent=1 // pred_region
      %s54 = ssub.s32 1024, 1024
      %55 = vsyncadd [#allocation6], %s54
      %s56 = sshll.u32 [#allocation7], 4
      %s57 = int_to_ptr.vmem [resolvable:$true] %s56
      %62 = dma.hbm_to_vmem [thread:$0]  %s7, 1024, %s57, [#allocation6], 64, 64, 4
    $region33: #{simplified_physics_model.1} parent=1 // pred_fallthru
      _
    // Predicated region
    $region34: #{simplified_physics_model.1} parent=1 // pred_check
      _
    $region35: #{simplified_physics_model.1} parent=1 // pred_check_branch
      %64 = sbr.rel (0) target = $region37
    $region36: #{simplified_physics_model.1} parent=1 // pred_region
      _
    $region37: #{simplified_physics_model.1} parent=1 // pred_fallthru
      _
    // Predicated region
    $region38: #{simplified_physics_model.1} parent=1 // pred_check
      _
    $region39: #{simplified_physics_model.1} parent=1 // pred_check_branch
      %66 = sbr.rel (0) target = $region41
    $region40: #{simplified_physics_model.1} parent=1 // pred_region
      %67 = dma.done [#allocation3], 2048
    $region41: #{simplified_physics_model.1} parent=1 // pred_fallthru
      _
    // Predicated region
    $region42: #{simplified_physics_model.1} parent=1 // pred_check
      _
    $region43: #{simplified_physics_model.1} parent=1 // pred_check_branch
      %69 = sbr.rel (0) target = $region45
    $region44: #{simplified_physics_model.1} parent=1 // pred_region
      %70 = dma.done [#allocation6], 2048
    $region45: #{simplified_physics_model.1} parent=1 // pred_fallthru
      _
    // Predicated region
    $region46: #{simplified_physics_model.1} parent=1 // pred_check
      _
    $region47: #{simplified_physics_model.1} parent=1 // pred_check_branch
      %72 = sbr.rel (0) target = $region49
    $region48: #{simplified_physics_model.1} parent=1 // pred_region
      %73 = dma.done [#allocation6], 1024
    $region49: #{simplified_physics_model.1} parent=1 // pred_fallthru
      _
    %v75 = vld [vmem:[%s0] sm:$0xff]
    %v76 = vld [vmem:[%s0 + $0x8] sm:$0xff]
    %v77 = vpack.c.bf16 %v76, %v75
    %v78 = vld [vmem:[%s1] sm:$0xf]
    %v79 = vld [vmem:[%s1 + $0x4] sm:$0xf]
    %v80 = vld [vmem:[%s1 + $0x8] sm:$0xf]
    %v81 = vld [vmem:[%s1 + $0xc] sm:$0xf]
    %v82 = vld [vmem:[%s2] sm:$0x1]
    %v84 = vlaneseq
    %v85 = vshrl.u32 %v84, 7
    %v86 = vsub.s32 0, %v85
    %v87 = vrot.slane %v82, %v86
    %v93 = vunpack.c.l.b16 %v78
    %v94 = vunpack.c.l.b16 %v79
    %v95 = vunpack.c.l.b16 %v80
    %v96 = vunpack.c.l.b16 %v81
    %v97 = vpack.c.b16 %v94, %v93
    %v98 = vpack.c.b16 %v96, %v95
    %vm101 = vcmask 261120
    %v103 = vsel %vm101, %v77, 0
    %105 = vmatprep.subr.bf16.mxu0 0
    %106 = vmatpush1.bf16.msra.mxu0 %v97
    %107 = vmatprep.subr.bf16.mxu0 0
    %108 = vmatpush1.bf16.msra.mxu0 %v98
    %109 = vmatprep.subr.bf16.mxu0 0
    %110 = vmatpush1.bf16.msra.mxu0 0
    %111 = vmatprep.subr.bf16.mxu0 0
    %112 = vmatpush1.bf16.msra.mxu0 0
    %113 = vmatprep.subr.bf16.mxu0 0
    %114 = vmatpush1.bf16.msra.mxu0 0
    %115 = vmatprep.subr.bf16.mxu0 0
    %116 = vmatpush1.bf16.msra.mxu0 0
    %117 = vmatprep.subr.bf16.mxu0 0
    %118 = vmatpush1.bf16.msra.mxu0 0
    %119 = vmatprep.subr.bf16.mxu0 0
    %120 = vmatpush1.bf16.msra.mxu0 0
    %121 = vmatprep.subr.bf16.mxu0 0
    %122 = vmatpush1.bf16.msra.mxu0 0
    %123 = vmatprep.subr.bf16.mxu0 0
    %124 = vmatpush1.bf16.msra.mxu0 0
    %125 = vmatprep.subr.bf16.mxu0 0
    %126 = vmatpush1.bf16.msra.mxu0 0
    %127 = vmatprep.subr.bf16.mxu0 0
    %128 = vmatpush1.bf16.msra.mxu0 0
    %129 = vmatprep.subr.bf16.mxu0 0
    %130 = vmatpush1.bf16.msra.mxu0 0
    %131 = vmatprep.subr.bf16.mxu0 0
    %132 = vmatpush1.bf16.msra.mxu0 0
    %133 = vmatprep.subr.bf16.mxu0 0
    %134 = vmatpush1.bf16.msra.mxu0 0
    %135 = vmatprep.subr.bf16.mxu0 0
    %136 = vmatpush1.bf16.msra.mxu0 0
    %137 = vmatprep.mubr.bf16.mxu0 0
    %138 = vmatmul.mubr.bf16.gmra.mrb[0].mxu0 %v103
    %v139 = vpop.f32.mrb[0].mxu0
    %v140 = vadd.f32 %v87, %v139
    %v141 = vpop.f32.mrb[0].mxu0
    %v142 = vpop.f32.mrb[0].mxu0
    %v143 = vadd.f32 %v87, %v142
    %v144 = vpop.f32.mrb[0].mxu0
    %145 = vdwg.mxu0
    %v146 = vmax.f32 %v140, 0.0
    %v147 = vmax.f32 %v143, 0.0
    %v148 = vpack.c.bf16 %v147, %v146
    %v149 = vld [vmem:[#allocation2] sm:$0xff]
    %v150 = vld [vmem:[#allocation2 + $0x8] sm:$0xff]
    %v151 = vld [vmem:[#allocation2 + $0x10] sm:$0xff]
    %v152 = vld [vmem:[#allocation2 + $0x18] sm:$0xff]
    %v153 = vld [vmem:[#allocation2 + $0x20] sm:$0xff]
    %v154 = vld [vmem:[#allocation2 + $0x28] sm:$0xff]
    %v155 = vld [vmem:[#allocation2 + $0x30] sm:$0xff]
    %v156 = vld [vmem:[#allocation2 + $0x38] sm:$0xff]
    %v157 = vld [vmem:[#allocation2 + $0x40] sm:$0xff]
    %v158 = vld [vmem:[#allocation2 + $0x48] sm:$0xff]
    %v159 = vld [vmem:[#allocation2 + $0x50] sm:$0xff]
    %v160 = vld [vmem:[#allocation2 + $0x58] sm:$0xff]
    %v161 = vld [vmem:[#allocation2 + $0x60] sm:$0xff]
    %v162 = vld [vmem:[#allocation2 + $0x68] sm:$0xff]
    %v163 = vld [vmem:[#allocation2 + $0x70] sm:$0xff]
    %v164 = vld [vmem:[#allocation2 + $0x78] sm:$0xff]
    %v165 = vld [vmem:[%s4] sm:$0x3]
    %v167 = vlaneseq
    %v168 = vshrl.u32 %v167, 7
    %v169 = vsub.s32 0, %v168
    %v170 = vrot.slane %v165, %v169
    %v171 = vlaneseq
    %v172 = vshrl.u32 %v171, 7
    %v173 = vsub.s32 1, %v172
    %v174 = vrot.slane %v165, %v173
    %v193 = vunpack.c.l.b16 %v149
    %v194 = vunpack.c.h.b16 %v149
    %v195 = vunpack.c.l.b16 %v150
    %v196 = vunpack.c.h.b16 %v150
    %v197 = vunpack.c.l.b16 %v151
    %v198 = vunpack.c.h.b16 %v151
    %v199 = vunpack.c.l.b16 %v152
    %v200 = vunpack.c.h.b16 %v152
    %v201 = vunpack.c.l.b16 %v153
    %v202 = vunpack.c.h.b16 %v153
    %v203 = vunpack.c.l.b16 %v154
    %v204 = vunpack.c.h.b16 %v154
    %v205 = vunpack.c.l.b16 %v155
    %v206 = vunpack.c.h.b16 %v155
    %v207 = vunpack.c.l.b16 %v156
    %v208 = vunpack.c.h.b16 %v156
    %v209 = vunpack.c.l.b16 %v157
    %v210 = vunpack.c.h.b16 %v157
    %v211 = vunpack.c.l.b16 %v158
    %v212 = vunpack.c.h.b16 %v158
    %v213 = vunpack.c.l.b16 %v159
    %v214 = vunpack.c.h.b16 %v159
    %v215 = vunpack.c.l.b16 %v160
    %v216 = vunpack.c.h.b16 %v160
    %v217 = vunpack.c.l.b16 %v161
    %v218 = vunpack.c.h.b16 %v161
    %v219 = vunpack.c.l.b16 %v162
    %v220 = vunpack.c.h.b16 %v162
    %v221 = vunpack.c.l.b16 %v163
    %v222 = vunpack.c.h.b16 %v163
    %v223 = vunpack.c.l.b16 %v164
    %v224 = vunpack.c.h.b16 %v164
    %v225 = vpack.c.b16 %v195, %v193
    %v226 = vpack.c.b16 %v196, %v194
    %v227 = vpack.c.b16 %v199, %v197
    %v228 = vpack.c.b16 %v200, %v198
    %v229 = vpack.c.b16 %v203, %v201
    %v230 = vpack.c.b16 %v204, %v202
    %v231 = vpack.c.b16 %v207, %v205
    %v232 = vpack.c.b16 %v208, %v206
    %v233 = vpack.c.b16 %v211, %v209
    %v234 = vpack.c.b16 %v212, %v210
    %v235 = vpack.c.b16 %v215, %v213
    %v236 = vpack.c.b16 %v216, %v214
    %v237 = vpack.c.b16 %v219, %v217
    %v238 = vpack.c.b16 %v220, %v218
    %v239 = vpack.c.b16 %v223, %v221
    %v240 = vpack.c.b16 %v224, %v222
    %257 = vmatprep.subr.bf16.mxu0 %v226
    %258 = vmatpush1.bf16.msra.mxu0 %v225
    %259 = vmatprep.subr.bf16.mxu0 %v228
    %260 = vmatpush1.bf16.msra.mxu0 %v227
    %261 = vmatprep.subr.bf16.mxu0 %v230
    %262 = vmatpush1.bf16.msra.mxu0 %v229
    %263 = vmatprep.subr.bf16.mxu0 %v232
    %264 = vmatpush1.bf16.msra.mxu0 %v231
    %265 = vmatprep.subr.bf16.mxu0 %v234
    %266 = vmatpush1.bf16.msra.mxu0 %v233
    %267 = vmatprep.subr.bf16.mxu0 %v236
    %268 = vmatpush1.bf16.msra.mxu0 %v235
    %269 = vmatprep.subr.bf16.mxu0 %v238
    %270 = vmatpush1.bf16.msra.mxu0 %v237
    %271 = vmatprep.subr.bf16.mxu0 %v240
    %272 = vmatpush1.bf16.msra.mxu0 %v239
    %273 = vmatprep.subr.bf16.mxu0 0
    %274 = vmatpush1.bf16.msra.mxu0 0
    %275 = vmatprep.subr.bf16.mxu0 0
    %276 = vmatpush1.bf16.msra.mxu0 0
    %277 = vmatprep.subr.bf16.mxu0 0
    %278 = vmatpush1.bf16.msra.mxu0 0
    %279 = vmatprep.subr.bf16.mxu0 0
    %280 = vmatpush1.bf16.msra.mxu0 0
    %281 = vmatprep.subr.bf16.mxu0 0
    %282 = vmatpush1.bf16.msra.mxu0 0
    %283 = vmatprep.subr.bf16.mxu0 0
    %284 = vmatpush1.bf16.msra.mxu0 0
    %285 = vmatprep.subr.bf16.mxu0 0
    %286 = vmatpush1.bf16.msra.mxu0 0
    %287 = vmatprep.subr.bf16.mxu0 0
    %288 = vmatpush1.bf16.msra.mxu0 0
    %289 = vmatprep.mubr.bf16.mxu0 0
    %290 = vmatmul.mubr.bf16.gmra.mrb[0].mxu0 %v148
    %v291 = vpop.f32.mrb[0].mxu0
    %v292 = vadd.f32 %v170, %v291
    %v293 = vpop.f32.mrb[0].mxu0
    %v294 = vadd.f32 %v174, %v293
    %v295 = vpop.f32.mrb[0].mxu0
    %v296 = vadd.f32 %v170, %v295
    %v297 = vpop.f32.mrb[0].mxu0
    %v298 = vadd.f32 %v174, %v297
    %299 = vdwg.mxu0
    %v300 = vmax.f32 %v292, 0.0
    %v301 = vmax.f32 %v294, 0.0
    %v302 = vmax.f32 %v296, 0.0
    %v303 = vmax.f32 %v298, 0.0
    %v304 = vpack.c.bf16 %v302, %v300
    %v305 = vpack.c.bf16 %v303, %v301
    %v306 = vld [vmem:[#allocation5] sm:$0xf]
    %v307 = vld [vmem:[#allocation5 + $0x4] sm:$0xf]
    %v308 = vld [vmem:[#allocation5 + $0x8] sm:$0xf]
    %v309 = vld [vmem:[#allocation5 + $0xc] sm:$0xf]
    %v310 = vld [vmem:[#allocation5 + $0x10] sm:$0xf]
    %v311 = vld [vmem:[#allocation5 + $0x14] sm:$0xf]
    %v312 = vld [vmem:[#allocation5 + $0x18] sm:$0xf]
    %v313 = vld [vmem:[#allocation5 + $0x1c] sm:$0xf]
    %v314 = vld [vmem:[#allocation5 + $0x20] sm:$0xf]
    %v315 = vld [vmem:[#allocation5 + $0x24] sm:$0xf]
    %v316 = vld [vmem:[#allocation5 + $0x28] sm:$0xf]
    %v317 = vld [vmem:[#allocation5 + $0x2c] sm:$0xf]
    %v318 = vld [vmem:[#allocation5 + $0x30] sm:$0xf]
    %v319 = vld [vmem:[#allocation5 + $0x34] sm:$0xf]
    %v320 = vld [vmem:[#allocation5 + $0x38] sm:$0xf]
    %v321 = vld [vmem:[#allocation5 + $0x3c] sm:$0xf]
    %v322 = vld [vmem:[#allocation5 + $0x40] sm:$0xf]
    %v323 = vld [vmem:[#allocation5 + $0x44] sm:$0xf]
    %v324 = vld [vmem:[#allocation5 + $0x48] sm:$0xf]
    %v325 = vld [vmem:[#allocation5 + $0x4c] sm:$0xf]
    %v326 = vld [vmem:[#allocation5 + $0x50] sm:$0xf]
    %v327 = vld [vmem:[#allocation5 + $0x54] sm:$0xf]
    %v328 = vld [vmem:[#allocation5 + $0x58] sm:$0xf]
    %v329 = vld [vmem:[#allocation5 + $0x5c] sm:$0xf]
    %v330 = vld [vmem:[#allocation5 + $0x60] sm:$0xf]
    %v331 = vld [vmem:[#allocation5 + $0x64] sm:$0xf]
    %v332 = vld [vmem:[#allocation5 + $0x68] sm:$0xf]
    %v333 = vld [vmem:[#allocation5 + $0x6c] sm:$0xf]
    %v334 = vld [vmem:[#allocation5 + $0x70] sm:$0xf]
    %v335 = vld [vmem:[#allocation5 + $0x74] sm:$0xf]
    %v336 = vld [vmem:[#allocation5 + $0x78] sm:$0xf]
    %v337 = vld [vmem:[#allocation5 + $0x7c] sm:$0xf]
    %v338 = vld [vmem:[%s6] sm:$0x1]
    %v340 = vlaneseq
    %v341 = vshrl.u32 %v340, 7
    %v342 = vsub.s32 0, %v341
    %v343 = vrot.slane %v338, %v342
    %v377 = vunpack.c.l.b16 %v306
    %v378 = vunpack.c.l.b16 %v307
    %v379 = vunpack.c.l.b16 %v308
    %v380 = vunpack.c.l.b16 %v309
    %v381 = vunpack.c.l.b16 %v310
    %v382 = vunpack.c.l.b16 %v311
    %v383 = vunpack.c.l.b16 %v312
    %v384 = vunpack.c.l.b16 %v313
    %v385 = vunpack.c.l.b16 %v314
    %v386 = vunpack.c.l.b16 %v315
    %v387 = vunpack.c.l.b16 %v316
    %v388 = vunpack.c.l.b16 %v317
    %v389 = vunpack.c.l.b16 %v318
    %v390 = vunpack.c.l.b16 %v319
    %v391 = vunpack.c.l.b16 %v320
    %v392 = vunpack.c.l.b16 %v321
    %v393 = vunpack.c.l.b16 %v322
    %v394 = vunpack.c.l.b16 %v323
    %v395 = vunpack.c.l.b16 %v324
    %v396 = vunpack.c.l.b16 %v325
    %v397 = vunpack.c.l.b16 %v326
    %v398 = vunpack.c.l.b16 %v327
    %v399 = vunpack.c.l.b16 %v328
    %v400 = vunpack.c.l.b16 %v329
    %v401 = vunpack.c.l.b16 %v330
    %v402 = vunpack.c.l.b16 %v331
    %v403 = vunpack.c.l.b16 %v332
    %v404 = vunpack.c.l.b16 %v333
    %v405 = vunpack.c.l.b16 %v334
    %v406 = vunpack.c.l.b16 %v335
    %v407 = vunpack.c.l.b16 %v336
    %v408 = vunpack.c.l.b16 %v337
    %v409 = vpack.c.b16 %v378, %v377
    %v410 = vpack.c.b16 %v380, %v379
    %v411 = vpack.c.b16 %v382, %v381
    %v412 = vpack.c.b16 %v384, %v383
    %v413 = vpack.c.b16 %v386, %v385
    %v414 = vpack.c.b16 %v388, %v387
    %v415 = vpack.c.b16 %v390, %v389
    %v416 = vpack.c.b16 %v392, %v391
    %v417 = vpack.c.b16 %v394, %v393
    %v418 = vpack.c.b16 %v396, %v395
    %v419 = vpack.c.b16 %v398, %v397
    %v420 = vpack.c.b16 %v400, %v399
    %v421 = vpack.c.b16 %v402, %v401
    %v422 = vpack.c.b16 %v404, %v403
    %v423 = vpack.c.b16 %v406, %v405
    %v424 = vpack.c.b16 %v408, %v407
    %441 = vmatprep.subr.bf16.mxu0 0
    %442 = vmatpush1.bf16.msra.mxu0 %v409
    %443 = vmatprep.subr.bf16.mxu0 0
    %444 = vmatpush1.bf16.msra.mxu0 %v410
    %445 = vmatprep.subr.bf16.mxu0 0
    %446 = vmatpush1.bf16.msra.mxu0 %v411
    %447 = vmatprep.subr.bf16.mxu0 0
    %448 = vmatpush1.bf16.msra.mxu0 %v412
    %449 = vmatprep.subr.bf16.mxu0 0
    %450 = vmatpush1.bf16.msra.mxu0 %v413
    %451 = vmatprep.subr.bf16.mxu0 0
    %452 = vmatpush1.bf16.msra.mxu0 %v414
    %453 = vmatprep.subr.bf16.mxu0 0
    %454 = vmatpush1.bf16.msra.mxu0 %v415
    %455 = vmatprep.subr.bf16.mxu0 0
    %456 = vmatpush1.bf16.msra.mxu0 %v416
    %457 = vmatprep.subr.bf16.mxu0 0
    %458 = vmatpush1.bf16.msra.mxu0 %v417
    %459 = vmatprep.subr.bf16.mxu0 0
    %460 = vmatpush1.bf16.msra.mxu0 %v418
    %461 = vmatprep.subr.bf16.mxu0 0
    %462 = vmatpush1.bf16.msra.mxu0 %v419
    %463 = vmatprep.subr.bf16.mxu0 0
    %464 = vmatpush1.bf16.msra.mxu0 %v420
    %465 = vmatprep.subr.bf16.mxu0 0
    %466 = vmatpush1.bf16.msra.mxu0 %v421
    %467 = vmatprep.subr.bf16.mxu0 0
    %468 = vmatpush1.bf16.msra.mxu0 %v422
    %469 = vmatprep.subr.bf16.mxu0 0
    %470 = vmatpush1.bf16.msra.mxu0 %v423
    %471 = vmatprep.subr.bf16.mxu0 0
    %472 = vmatpush1.bf16.msra.mxu0 %v424
    %473 = vmatprep.mubr.bf16.mxu0 %v305
    %474 = vmatmul.mubr.bf16.gmra.mrb[0].mxu0 %v304
    %v475 = vpop.f32.mrb[0].mxu0
    %v476 = vadd.f32 %v343, %v475
    %v477 = vpop.f32.mrb[0].mxu0
    %v478 = vpop.f32.mrb[0].mxu0
    %v479 = vadd.f32 %v343, %v478
    %v480 = vpop.f32.mrb[0].mxu0
    %481 = vdwg.mxu0
    %v482 = vmax.f32 %v476, 0.0
    %v483 = vmax.f32 %v479, 0.0
    %v484 = vpack.c.bf16 %v483, %v482
    %v485 = vld [vmem:[#allocation7] sm:$0xf]
    %v486 = vld [vmem:[#allocation7 + $0x4] sm:$0xf]
    %v487 = vld [vmem:[#allocation7 + $0x8] sm:$0xf]
    %v488 = vld [vmem:[#allocation7 + $0xc] sm:$0xf]
    %v489 = vld [vmem:[#allocation7 + $0x10] sm:$0xf]
    %v490 = vld [vmem:[#allocation7 + $0x14] sm:$0xf]
    %v491 = vld [vmem:[#allocation7 + $0x18] sm:$0xf]
    %v492 = vld [vmem:[#allocation7 + $0x1c] sm:$0xf]
    %v493 = vld [vmem:[#allocation7 + $0x20] sm:$0xf]
    %v494 = vld [vmem:[#allocation7 + $0x24] sm:$0xf]
    %v495 = vld [vmem:[#allocation7 + $0x28] sm:$0xf]
    %v496 = vld [vmem:[#allocation7 + $0x2c] sm:$0xf]
    %v497 = vld [vmem:[#allocation7 + $0x30] sm:$0xf]
    %v498 = vld [vmem:[#allocation7 + $0x34] sm:$0xf]
    %v499 = vld [vmem:[#allocation7 + $0x38] sm:$0xf]
    %v500 = vld [vmem:[#allocation7 + $0x3c] sm:$0xf]
    %v501 = vld [vmem:[%s8] sm:$0x1]
    %v503 = vlaneseq
    %v504 = vshrl.u32 %v503, 7
    %v505 = vsub.s32 0, %v504
    %v506 = vrot.slane %v501, %v505
    %v524 = vunpack.c.l.b16 %v485
    %v525 = vunpack.c.l.b16 %v486
    %v526 = vunpack.c.l.b16 %v487
    %v527 = vunpack.c.l.b16 %v488
    %v528 = vunpack.c.l.b16 %v489
    %v529 = vunpack.c.l.b16 %v490
    %v530 = vunpack.c.l.b16 %v491
    %v531 = vunpack.c.l.b16 %v492
    %v532 = vunpack.c.l.b16 %v493
    %v533 = vunpack.c.l.b16 %v494
    %v534 = vunpack.c.l.b16 %v495
    %v535 = vunpack.c.l.b16 %v496
    %v536 = vunpack.c.l.b16 %v497
    %v537 = vunpack.c.l.b16 %v498
    %v538 = vunpack.c.l.b16 %v499
    %v539 = vunpack.c.l.b16 %v500
    %v540 = vpack.c.b16 %v525, %v524
    %v541 = vpack.c.b16 %v527, %v526
    %v542 = vpack.c.b16 %v529, %v528
    %v543 = vpack.c.b16 %v531, %v530
    %v544 = vpack.c.b16 %v533, %v532
    %v545 = vpack.c.b16 %v535, %v534
    %v546 = vpack.c.b16 %v537, %v536
    %v547 = vpack.c.b16 %v539, %v538
    %556 = vmatprep.subr.bf16.mxu0 0
    %557 = vmatpush1.bf16.msra.mxu0 %v540
    %558 = vmatprep.subr.bf16.mxu0 0
    %559 = vmatpush1.bf16.msra.mxu0 %v541
    %560 = vmatprep.subr.bf16.mxu0 0
    %561 = vmatpush1.bf16.msra.mxu0 %v542
    %562 = vmatprep.subr.bf16.mxu0 0
    %563 = vmatpush1.bf16.msra.mxu0 %v543
    %564 = vmatprep.subr.bf16.mxu0 0
    %565 = vmatpush1.bf16.msra.mxu0 %v544
    %566 = vmatprep.subr.bf16.mxu0 0
    %567 = vmatpush1.bf16.msra.mxu0 %v545
    %568 = vmatprep.subr.bf16.mxu0 0
    %569 = vmatpush1.bf16.msra.mxu0 %v546
    %570 = vmatprep.subr.bf16.mxu0 0
    %571 = vmatpush1.bf16.msra.mxu0 %v547
    %572 = vmatprep.subr.bf16.mxu0 0
    %573 = vmatpush1.bf16.msra.mxu0 0
    %574 = vmatprep.subr.bf16.mxu0 0
    %575 = vmatpush1.bf16.msra.mxu0 0
    %576 = vmatprep.subr.bf16.mxu0 0
    %577 = vmatpush1.bf16.msra.mxu0 0
    %578 = vmatprep.subr.bf16.mxu0 0
    %579 = vmatpush1.bf16.msra.mxu0 0
    %580 = vmatprep.subr.bf16.mxu0 0
    %581 = vmatpush1.bf16.msra.mxu0 0
    %582 = vmatprep.subr.bf16.mxu0 0
    %583 = vmatpush1.bf16.msra.mxu0 0
    %584 = vmatprep.subr.bf16.mxu0 0
    %585 = vmatpush1.bf16.msra.mxu0 0
    %586 = vmatprep.subr.bf16.mxu0 0
    %587 = vmatpush1.bf16.msra.mxu0 0
    %588 = vmatprep.mubr.bf16.mxu0 0
    %589 = vmatmul.mubr.bf16.gmra.mrb[0].mxu0 %v484
    %v590 = vpop.f32.mrb[0].mxu0
    %v591 = vadd.f32 %v506, %v590
    %v592 = vpop.f32.mrb[0].mxu0
    %v593 = vpop.f32.mrb[0].mxu0
    %v594 = vadd.f32 %v506, %v593
    %v595 = vpop.f32.mrb[0].mxu0
    %596 = vdwg.mxu0
    %597 = vst [vmem:[#allocation8] sm:$0xff] %v591
    %598 = vst [vmem:[#allocation8 + $0x8] sm:$0xff] %v594
    // Predicated region
    $region50: #{simplified_physics_model.1} parent=1 // pred_check
      _
    $region51: #{simplified_physics_model.1} parent=1 // pred_check_branch
      %600 = sbr.rel (0) target = $region53
    $region52: #{simplified_physics_model.1} parent=1 // pred_region
      %s602 = ssub.s32 256, 256
      %603 = vsyncadd [#allocation4], %s602
      %s604 = sshll.u32 [#allocation8], 4
      %s605 = int_to_ptr.vmem [resolvable:$true] %s604
      %610 = dma.vmem_to_hbm [thread:$0]  %s605, 256, %s9, [#allocation4], 128, 128, 8
    $region53: #{simplified_physics_model.1} parent=1 // pred_fallthru
      _
    // Predicated region
    $region54: #{simplified_physics_model.1} parent=1 // pred_check
      _
    $region55: #{simplified_physics_model.1} parent=1 // pred_check_branch
      %612 = sbr.rel (0) target = $region57
    $region56: #{simplified_physics_model.1} parent=1 // pred_region
      %613 = dma.done [#allocation4], 256
    $region57: #{simplified_physics_model.1} parent=1 // pred_fallthru
      _
    %614 = vsyncpa [#allocation3], 1
    %615 = vsyncpa [#allocation6], 1
    %616 = vsyncpa [#allocation4], 1

</llo_original>
